<compile_context>
chip_gen: v7x
topology: tpu7x:2x2x1
jax: 0.10.0
libtpu: 0.0.40
codegen_flags: <defaults>
</compile_context>

<pallas_src>
import jax
import jax.numpy as jnp
from jax.experimental import pallas as pl
from jax.experimental.pallas import tpu as pltpu

DATALEN = 32          # datalength == enc_fclayer_sizes[0] == dec_fclayer_sizes[-1]
ENC_HID = 16          # enc_fclayer_sizes[-1]
LATENT = 8            # latent_size
DEC_HID = 16          # dec_fclayer_sizes[0]

IN_W = DATALEN + LATENT          # packed input slab : x(32) | eps(8)            = 40 lanes
OUT_W = DATALEN + 3 * LATENT     # packed output slab: recon(32)|means|logvar|z  = 56 lanes

# ---- packed parameter slab layout: (in, out) weights, every block 8-row aligned ----
ROW_WE = 0            # rows  0:32, cols 0:16   encoder Linear(32 -> 16)
ROW_WH = 32           # rows 32:48, cols 0:16   [linear_means | linear_log_var] fused (16 -> 16)
ROW_WD0 = 48          # rows 48:56, cols 0:16   decoder L0 (8 -> 16)
ROW_WD1 = 56          # rows 56:72, cols 0:32   decoder L1 (16 -> 32)
ROW_BE = 72           # biases on 8-aligned rows (no per-step sublane shuffle of the slab)
ROW_BH = 80
ROW_BD0 = 88
ROW_BD1 = 96
SLAB_ROWS = 104
SLAB_COLS = 32


def _round_up(n, m):
    return (n + m - 1) // m * m


def _cdiv(a, b):
    return (a + b - 1) // b


def vae_kernel(xe_ref, p_ref, out_ref):
    f32 = jnp.float32

    # One load of the packed activation tile; cast to f32 once (v5e has no bf16 VPU/EUP).
    xe = xe_ref[...].astype(f32)                    # (TILE_B, 40)
    x = xe[:, 0:DATALEN]                            # (TILE_B, 32)
    eps = xe[:, DATALEN:IN_W]                       # (TILE_B, 8)

    # Slice the VMEM-resident parameter slab ref directly (all starts 8-row aligned).
    we = p_ref[ROW_WE:ROW_WE + DATALEN, 0:ENC_HID].astype(f32)      # (32, 16)
    wh = p_ref[ROW_WH:ROW_WH + ENC_HID, 0:2 * LATENT].astype(f32)   # (16, 16) means|log_var
    wd0 = p_ref[ROW_WD0:ROW_WD0 + LATENT, 0:DEC_HID].astype(f32)    # (8, 16)
    wd1 = p_ref[ROW_WD1:ROW_WD1 + DEC_HID, 0:DATALEN].astype(f32)   # (16, 32)
    be = p_ref[ROW_BE:ROW_BE + 1, 0:ENC_HID].astype(f32)            # (1, 16)
    bh = p_ref[ROW_BH:ROW_BH + 1, 0:2 * LATENT].astype(f32)         # (1, 16)
    bd0 = p_ref[ROW_BD0:ROW_BD0 + 1, 0:DEC_HID].astype(f32)         # (1, 16)
    bd1 = p_ref[ROW_BD1:ROW_BD1 + 1, 0:DATALEN].astype(f32)         # (1, 32)

    # ---- Encoder MLP_2: Linear then trailing ReLU ----
    h = jnp.maximum(jnp.dot(x, we, preferred_element_type=f32) + be, 0.0)

    # ---- Fused means / log_var heads (one matmul, split by lane slice) ----
    head = jnp.dot(h, wh, preferred_element_type=f32) + bh          # (TILE_B, 16)
    means = head[:, 0:LATENT]
    log_var = head[:, LATENT:2 * LATENT]

    # ---- Reparameterization ----
    z = eps * jnp.exp(0.5 * log_var) + means

    # ---- Decoder: Linear + ReLU, Linear + Sigmoid ----
    d1 = jnp.maximum(jnp.dot(z, wd0, preferred_element_type=f32) + bd0, 0.0)
    logits = jnp.dot(d1, wd1, preferred_element_type=f32) + bd1
    e = jnp.exp(-jnp.abs(logits))                   # numerically-stable sigmoid
    recon = jnp.where(logits >= 0.0, 1.0 / (1.0 + e), e / (1.0 + e))

    # ---- Single lane-contiguous packed store: recon | (means|log_var) | z ----
    out_ref[...] = jnp.concatenate([recon, head, z], axis=-1).astype(out_ref.dtype)


def _choose_tile(batch, max_tile_b):
    """Pick an 8-aligned batch tile; keep >= 2 grid steps once each half is big enough."""
    b8 = _round_up(max(batch, 1), 8)
    tb = min(max_tile_b, b8)
    half = _round_up(_cdiv(b8, 2), 8)
    if half >= 512:        # each half-tile still moves >> per-step pipeline overhead
        tb = min(tb, half)  # -> grid >= 2: v7x's two TensorCores + DMA/compute overlap
    return b8, tb


def vae_forward(x, eps, param_slab, *, max_tile_b=4096, io_dtype=jnp.bfloat16):
    """x: (B, 32) f32, eps: (B, 8) f32, param_slab: (104, 32) packed weights/biases."""
    batch = x.shape[0]

    # Pack x|eps into ONE lane-contiguous slab and cast to the IO dtype in a single
    # fused XLA op (single input DMA stream; fuses with upstream producers in real use).
    xe = jnp.concatenate([x, eps], axis=-1).astype(io_dtype)        # (B, 40)
    params = param_slab.astype(io_dtype)                            # no-op if pre-packed

    b8, tb = _choose_tile(batch, max_tile_b)
    if b8 != batch:                      # pad at most 7 rows -> negligible HBM traffic
        xe = jnp.pad(xe, ((0, b8 - batch), (0, 0)))
    grid = _cdiv(b8, tb)                 # non-divisible tail tile is masked by Pallas

    out = pl.pallas_call(
        vae_kernel,
        out_shape=jax.ShapeDtypeStruct((b8, OUT_W), io_dtype),
        grid=(grid,),
        in_specs=[
            pl.BlockSpec((tb, IN_W), lambda i: (i, 0)),               # packed x|eps tile
            pl.BlockSpec((SLAB_ROWS, SLAB_COLS), lambda i: (0, 0)),   # weights: VMEM-resident
        ],
        out_specs=pl.BlockSpec((tb, OUT_W), lambda i: (i, 0)),
        compiler_params=pltpu.CompilerParams(
            dimension_semantics=("parallel",),            # v7x: shard grid across 2 TCs
            vmem_limit_bytes=32 * 1024 * 1024),           # explicit, safe on v5e/v6e/v7x
    )(xe, params)

    out = out[:batch].astype(jnp.float32)
    recon = out[:, 0:DATALEN].reshape(-1, 1, DATALEN)    # torch.reshape(x, (-1, 1, datalength))
    means = out[:, DATALEN:DATALEN + LATENT]
    log_var = out[:, DATALEN + LATENT:DATALEN + 2 * LATENT]
    z = out[:, DATALEN + 2 * LATENT:OUT_W]
    return recon, means, log_var, z


def init_params(key):
    """Deterministic synthetic weights stored pre-transposed as (in, out), so the kernel
    computes x @ W (equivalent to torch's x @ W^T)."""
    ks = jax.random.split(key, 5)

    def lin(k, fan_in, fan_out):
        kw, kb = jax.random.split(k)
        bound = 1.0 / jnp.sqrt(fan_in)
        w = jax.random.uniform(kw, (fan_in, fan_out), jnp.float32, -bound, bound)
        b = jax.random.uniform(kb, (fan_out,), jnp.float32, -bound, bound)
        return w, b

    we, be = lin(ks[0], DATALEN, ENC_HID)     # encoder Linear(32, 16)
    wm, bm = lin(ks[1], ENC_HID, LATENT)      # linear_means
    wl, bl = lin(ks[2], ENC_HID, LATENT)      # linear_log_var
    wd0, bd0 = lin(ks[3], LATENT, DEC_HID)    # decoder L0
    wd1, bd1 = lin(ks[4], DEC_HID, DATALEN)   # decoder L1
    return (we, be, wm, bm, wl, bl, wd0, bd0, wd1, bd1)


def pack_params(params, dtype=jnp.bfloat16):
    """Pack all weights/biases into one lane-contiguous slab (single resident DMA)."""
    (we, be, wm, bm, wl, bl, wd0, bd0, wd1, bd1) = params
    slab = jnp.zeros((SLAB_ROWS, SLAB_COLS), jnp.float32)
    slab = slab.at[ROW_WE:ROW_WE + DATALEN, 0:ENC_HID].set(we)
    slab = slab.at[ROW_WH:ROW_WH + ENC_HID, 0:2 * LATENT].set(jnp.concatenate([wm, wl], axis=1))
    slab = slab.at[ROW_WD0:ROW_WD0 + LATENT, 0:DEC_HID].set(wd0)
    slab = slab.at[ROW_WD1:ROW_WD1 + DEC_HID, 0:DATALEN].set(wd1)
    slab = slab.at[ROW_BE, 0:ENC_HID].set(be)
    slab = slab.at[ROW_BH, 0:2 * LATENT].set(jnp.concatenate([bm, bl]))
    slab = slab.at[ROW_BD0, 0:DEC_HID].set(bd0)
    slab = slab.at[ROW_BD1, 0:DATALEN].set(bd1)
    return slab.astype(dtype)


def reference_forward(x, eps, params, io_dtype=jnp.float32):
    """Pure-JAX reference with the same HBM-boundary quantization as the kernel."""
    q = lambda a: a.astype(io_dtype).astype(jnp.float32)
    (we, be, wm, bm, wl, bl, wd0, bd0, wd1, bd1) = [q(p) for p in params]
    x = q(x)
    eps = q(eps)
    h = jnp.maximum(x @ we + be, 0.0)
    means = h @ wm + bm
    log_var = h @ wl + bl
    z = eps * jnp.exp(0.5 * log_var) + means
    d1 = jnp.maximum(z @ wd0 + bd0, 0.0)
    recon = jax.nn.sigmoid(d1 @ wd1 + bd1).reshape(-1, 1, DATALEN)
    return recon, means, log_var, z


if __name__ == "__main__":
    key = jax.random.PRNGKey(0)
    k_x, k_eps, k_p, k_xb, k_eb = jax.random.split(key, 5)

    params = init_params(k_p)
    slab_bf16 = pack_params(params, jnp.bfloat16)
    slab_f32 = pack_params(params, jnp.float32)

    # --- small batch (the module's nominal demo shape: batch=2), bf16 IO path ---
    B = 2
    x = jax.random.normal(k_x, (B, DATALEN), jnp.float32)
    # eps plays the role of torch.randn([batch_size, latent_size]); generated
    # deterministically host-side and fed to the kernel.
    eps = jax.random.normal(k_eps, (B, LATENT), jnp.float32)

    recon, means, log_var, z = jax.block_until_ready(vae_forward(x, eps, slab_bf16))
    rr, rm, rl, rz = reference_forward(x, eps, params, io_dtype=jnp.bfloat16)
    assert recon.shape == (B, 1, DATALEN)
    assert means.shape == (B, LATENT) and log_var.shape == (B, LATENT) and z.shape == (B, LATENT)
    assert jnp.allclose(recon, rr, rtol=1e-2, atol=3e-2)
    assert jnp.allclose(means, rm, rtol=1e-2, atol=3e-2)
    assert jnp.allclose(log_var, rl, rtol=1e-2, atol=3e-2)
    assert jnp.allclose(z, rz, rtol=1e-2, atol=3e-2)

    # --- exact-parity f32 IO path (same device, same default dot precision) ---
    recon32, means32, logvar32, z32 = jax.block_until_ready(
        vae_forward(x, eps, slab_f32, io_dtype=jnp.float32))
    rr32, rm32, rl32, rz32 = reference_forward(x, eps, params, io_dtype=jnp.float32)
    assert jnp.allclose(recon32, rr32, atol=1e-5)
    assert jnp.allclose(means32, rm32, atol=1e-5)
    assert jnp.allclose(logvar32, rl32, atol=1e-5)
    assert jnp.allclose(z32, rz32, atol=1e-5)

    # --- large, non-multiple-of-8 batch: exercises the big batch tiles, grid >= 2
    #     ("parallel" for v7x), the <=7-row pad, and the Pallas-masked tail tile ---
    BB = 4100
    xb = jax.random.normal(k_xb, (BB, DATALEN), jnp.float32)
    eb = jax.random.normal(k_eb, (BB, LATENT), jnp.float32)
    recon_b, means_b, logvar_b, z_b = jax.block_until_ready(vae_forward(xb, eb, slab_bf16))
    rrb, rmb, rlb, rzb = reference_forward(xb, eb, params, io_dtype=jnp.bfloat16)
    assert recon_b.shape == (BB, 1, DATALEN)
    assert jnp.allclose(recon_b, rrb, rtol=1e-2, atol=3e-2)
    assert jnp.allclose(means_b, rmb, rtol=1e-2, atol=3e-2)
    assert jnp.allclose(logvar_b, rlb, rtol=1e-2, atol=3e-2)
    assert jnp.allclose(z_b, rzb, rtol=1e-2, atol=3e-2)

    print("KERNEL_OK")
</pallas_src>

<mosaic_0001>
module attributes {stable_mosaic.version = 11 : i64} {
  func.func @vae_kernel(%arg0: i32, %arg1: memref<8x40xbf16, #tpu.memory_space<vmem>>, %arg2: memref<104x32xbf16, #tpu.memory_space<vmem>>, %arg3: memref<8x56xbf16, #tpu.memory_space<vmem>>) attributes {dimension_semantics = [#tpu.dimension_semantics<parallel>], iteration_bounds = array<i64: 1>, scalar_prefetch = 0 : i64, scratch_operands = 0 : i64, tpu.core_type = #tpu.core_type<tc>, window_params = [{transform_indices = @transform_0, window_bounds = array<i64: 8, 40>}, {pipeline_mode = #tpu.pipeline_mode<synchronous>, transform_indices = @transform_1, window_bounds = array<i64: 104, 32>}, {transform_indices = @transform_2, window_bounds = array<i64: 8, 56>}]} {
    %c0 = arith.constant 0 : index
    %c0_0 = arith.constant 0 : index
    %0 = vector.load %arg1[%c0, %c0_0] : memref<8x40xbf16, #tpu.memory_space<vmem>>, vector<8x40xbf16>
    %1 = arith.extf %0 : vector<8x40xbf16> to vector<8x40xf32>
    %2 = vector.extract_strided_slice %1 {offsets = [0, 0], sizes = [8, 32], strides = [1, 1]} : vector<8x40xf32> to vector<8x32xf32>
    %3 = vector.extract_strided_slice %1 {offsets = [0, 32], sizes = [8, 8], strides = [1, 1]} : vector<8x40xf32> to vector<8x8xf32>
    %c0_1 = arith.constant 0 : index
    %c0_2 = arith.constant 0 : index
    %4 = vector.load %arg2[%c0_1, %c0_2] : memref<104x32xbf16, #tpu.memory_space<vmem>>, vector<32x16xbf16>
    %5 = arith.extf %4 : vector<32x16xbf16> to vector<32x16xf32>
    %c32 = arith.constant 32 : index
    %c0_3 = arith.constant 0 : index
    %6 = vector.load %arg2[%c32, %c0_3] : memref<104x32xbf16, #tpu.memory_space<vmem>>, vector<16x16xbf16>
    %7 = arith.extf %6 : vector<16x16xbf16> to vector<16x16xf32>
    %c48 = arith.constant 48 : index
    %c0_4 = arith.constant 0 : index
    %8 = vector.load %arg2[%c48, %c0_4] : memref<104x32xbf16, #tpu.memory_space<vmem>>, vector<8x16xbf16>
    %9 = arith.extf %8 : vector<8x16xbf16> to vector<8x16xf32>
    %c56 = arith.constant 56 : index
    %c0_5 = arith.constant 0 : index
    %10 = vector.load %arg2[%c56, %c0_5] : memref<104x32xbf16, #tpu.memory_space<vmem>>, vector<16x32xbf16>
    %11 = arith.extf %10 : vector<16x32xbf16> to vector<16x32xf32>
    %c72 = arith.constant 72 : index
    %c0_6 = arith.constant 0 : index
    %12 = vector.load %arg2[%c72, %c0_6] : memref<104x32xbf16, #tpu.memory_space<vmem>>, vector<1x16xbf16>
    %13 = arith.extf %12 : vector<1x16xbf16> to vector<1x16xf32>
    %c80 = arith.constant 80 : index
    %c0_7 = arith.constant 0 : index
    %14 = vector.load %arg2[%c80, %c0_7] : memref<104x32xbf16, #tpu.memory_space<vmem>>, vector<1x16xbf16>
    %15 = arith.extf %14 : vector<1x16xbf16> to vector<1x16xf32>
    %c88 = arith.constant 88 : index
    %c0_8 = arith.constant 0 : index
    %16 = vector.load %arg2[%c88, %c0_8] : memref<104x32xbf16, #tpu.memory_space<vmem>>, vector<1x16xbf16>
    %17 = arith.extf %16 : vector<1x16xbf16> to vector<1x16xf32>
    %c96 = arith.constant 96 : index
    %c0_9 = arith.constant 0 : index
    %18 = vector.load %arg2[%c96, %c0_9] : memref<104x32xbf16, #tpu.memory_space<vmem>>, vector<1x32xbf16>
    %19 = arith.extf %18 : vector<1x32xbf16> to vector<1x32xf32>
    %cst = arith.constant dense<0.000000e+00> : vector<8x16xf32>
    %20 = tpu.matmul %2, %5, %cst {dimension_numbers = #tpu.dot_dimension_numbers<[1], [0], [0], [1], [0, 0, 1, 1], [], []>} : vector<8x32xf32>, vector<32x16xf32>, vector<8x16xf32> -> vector<8x16xf32>
    %21 = vector.broadcast %13 : vector<1x16xf32> to vector<8x16xf32>
    %22 = arith.addf %20, %21 : vector<8x16xf32>
    %cst_10 = arith.constant 0.000000e+00 : f32
    %23 = vector.broadcast %cst_10 : f32 to vector<8x16xf32>
    %24 = arith.maximumf %22, %23 : vector<8x16xf32>
    %cst_11 = arith.constant dense<0.000000e+00> : vector<8x16xf32>
    %25 = tpu.matmul %24, %7, %cst_11 {dimension_numbers = #tpu.dot_dimension_numbers<[1], [0], [0], [1], [0, 0, 1, 1], [], []>} : vector<8x16xf32>, vector<16x16xf32>, vector<8x16xf32> -> vector<8x16xf32>
    %26 = vector.broadcast %15 : vector<1x16xf32> to vector<8x16xf32>
    %27 = arith.addf %25, %26 : vector<8x16xf32>
    %28 = vector.extract_strided_slice %27 {offsets = [0, 0], sizes = [8, 8], strides = [1, 1]} : vector<8x16xf32> to vector<8x8xf32>
    %29 = vector.extract_strided_slice %27 {offsets = [0, 8], sizes = [8, 8], strides = [1, 1]} : vector<8x16xf32> to vector<8x8xf32>
    %cst_12 = arith.constant 5.000000e-01 : f32
    %30 = vector.broadcast %cst_12 : f32 to vector<8x8xf32>
    %31 = arith.mulf %30, %29 : vector<8x8xf32>
    %32 = math.exp %31 : vector<8x8xf32>
    %33 = arith.mulf %3, %32 : vector<8x8xf32>
    %34 = arith.addf %33, %28 : vector<8x8xf32>
    %cst_13 = arith.constant dense<0.000000e+00> : vector<8x16xf32>
    %35 = tpu.matmul %34, %9, %cst_13 {dimension_numbers = #tpu.dot_dimension_numbers<[1], [0], [0], [1], [0, 0, 1, 1], [], []>} : vector<8x8xf32>, vector<8x16xf32>, vector<8x16xf32> -> vector<8x16xf32>
    %36 = vector.broadcast %17 : vector<1x16xf32> to vector<8x16xf32>
    %37 = arith.addf %35, %36 : vector<8x16xf32>
    %cst_14 = arith.constant 0.000000e+00 : f32
    %38 = vector.broadcast %cst_14 : f32 to vector<8x16xf32>
    %39 = arith.maximumf %37, %38 : vector<8x16xf32>
    %cst_15 = arith.constant dense<0.000000e+00> : vector<8x32xf32>
    %40 = tpu.matmul %39, %11, %cst_15 {dimension_numbers = #tpu.dot_dimension_numbers<[1], [0], [0], [1], [0, 0, 1, 1], [], []>} : vector<8x16xf32>, vector<16x32xf32>, vector<8x32xf32> -> vector<8x32xf32>
    %41 = vector.broadcast %19 : vector<1x32xf32> to vector<8x32xf32>
    %42 = arith.addf %40, %41 : vector<8x32xf32>
    %43 = math.absf %42 : vector<8x32xf32>
    %cst_16 = arith.constant 0.000000e+00 : f32
    %44 = vector.broadcast %cst_16 : f32 to vector<8x32xf32>
    %45 = arith.subf %44, %43 : vector<8x32xf32>
    %46 = math.exp %45 : vector<8x32xf32>
    %cst_17 = arith.constant 0.000000e+00 : f32
    %47 = vector.broadcast %cst_17 : f32 to vector<8x32xf32>
    %48 = arith.cmpf oge, %42, %47 : vector<8x32xf32>
    %cst_18 = arith.constant 1.000000e+00 : f32
    %49 = vector.broadcast %cst_18 : f32 to vector<8x32xf32>
    %50 = arith.addf %49, %46 : vector<8x32xf32>
    %cst_19 = arith.constant 1.000000e+00 : f32
    %51 = vector.broadcast %cst_19 : f32 to vector<8x32xf32>
    %52 = arith.divf %51, %50 : vector<8x32xf32>
    %cst_20 = arith.constant 1.000000e+00 : f32
    %53 = vector.broadcast %cst_20 : f32 to vector<8x32xf32>
    %54 = arith.addf %53, %46 : vector<8x32xf32>
    %55 = arith.divf %46, %54 : vector<8x32xf32>
    %56 = arith.select %48, %52, %55 : vector<8x32xi1>, vector<8x32xf32>
    %57 = tpu.concatenate %56, %27, %34 in 1 : vector<8x32xf32>, vector<8x16xf32>, vector<8x8xf32> -> vector<8x56xf32>
    %58 = arith.truncf %57 : vector<8x56xf32> to vector<8x56xbf16>
    %c0_21 = arith.constant 0 : index
    %c0_22 = arith.constant 0 : index
    %59 = vector.load %arg3[%c0_21, %c0_22] : memref<8x56xbf16, #tpu.memory_space<vmem>>, vector<8x56xbf16>
    tpu.vector_store %arg3[%c0_21, %c0_22], %58 {strides = array<i32>} : memref<8x56xbf16, #tpu.memory_space<vmem>>, vector<8x56xbf16>,
    return
  }
  func.func @transform_0(%arg0: i32) -> (i32, i32) {
    %c0_i32 = arith.constant 0 : i32
    %c0_i32_0 = arith.constant 0 : i32
    return %arg0, %c0_i32 : i32, i32
  }
  func.func @transform_1(%arg0: i32) -> (i32, i32) {
    %c0_i32 = arith.constant 0 : i32
    %c0_i32_0 = arith.constant 0 : i32
    %c0_i32_1 = arith.constant 0 : i32
    return %c0_i32, %c0_i32_0 : i32, i32
  }
  func.func @transform_2(%arg0: i32) -> (i32, i32) {
    %c0_i32 = arith.constant 0 : i32
    %c0_i32_0 = arith.constant 0 : i32
    return %arg0, %c0_i32 : i32, i32
  }
}

</mosaic_0001>

<llo_original>
// kernel: tpu_custom_call.1
$region0: #{tpu_custom_call.1}
  #allocation0 [shape = 'u32[]', space=smem, size = 0x4, offset = 0x4, fixed_abs, tag = 'smem constant byte address 0x4 - core index']
  #allocation1 [shape = 'u32[144,128]{1,0:T(1,128)}', space=vmem, size = 0x12000, scoped, tag = 'internal scratch']
  %s0 = inlined_call_operand.vmem [shape: bf16[8,40], index: 0, kind: input, shape index: {}]
  %s1 = inlined_call_operand.vmem [shape: bf16[104,32], index: 1, kind: input, shape index: {}]
  %s2 = inlined_call_operand.hbm [shape: bf16[8,56], index: 2, kind: output, shape index: {}]
  %s3 = sld [smem:[#allocation0]]
  $region18: #{tpu_custom_call.1} parent=0
    _
  %s5 = ssub.s32 1, %s3
  %s6 = scalar_select 0, %s5, %s3
  $region1: #{tpu_custom_call.1} parent=0
    #allocation2 [shape = 'u8[2048]{0}', space=vmem, size = 0x800, scoped, tag = 'output window, operand 0, single buffered']
    #allocation3 [shape = 's32[1]{0}', space=sflag, size = 0x4, scoped, tag = 'scoped memory for tpu_custom_call.1']
    %7 = vsyncpa [#allocation3], 0
    // Predicated region
    $region2: #{tpu_custom_call.1} parent=1 // pred_check
      _
    $region3: #{tpu_custom_call.1} parent=1 // pred_check_branch
      %9 = sbr.rel (0) target = $region5
    $region4: #{tpu_custom_call.1} parent=1 // pred_region
      _
    $region5: #{tpu_custom_call.1} parent=1 // pred_fallthru
      _
    // Predicated region
    $region6: #{tpu_custom_call.1} parent=1 // pred_check
      _
    $region7: #{tpu_custom_call.1} parent=1 // pred_check_branch
      %11 = sbr.rel (0) target = $region9
    $region8: #{tpu_custom_call.1} parent=1 // pred_region
      _
    $region9: #{tpu_custom_call.1} parent=1 // pred_fallthru
      _
    %v12 = vld [vmem:[%s0] sm:$0xf]
    %v13 = vunpack.c.l.bf16 %v12
    %v14 = vld [vmem:[%s1] sm:$0xf]
    %v15 = vld [vmem:[%s1 + $0x4] sm:$0xf]
    %v16 = vld [vmem:[%s1 + $0x8] sm:$0xf]
    %v17 = vld [vmem:[%s1 + $0xc] sm:$0xf]
    %v18 = vunpack.c.l.bf16 %v14
    %v19 = vunpack.c.l.bf16 %v15
    %v20 = vunpack.c.l.bf16 %v16
    %v21 = vunpack.c.l.bf16 %v17
    %v22 = vld [vmem:[%s1 + $0x10] sm:$0xf]
    %v23 = vld [vmem:[%s1 + $0x14] sm:$0xf]
    %v24 = vunpack.c.l.bf16 %v22
    %v25 = vunpack.c.l.bf16 %v23
    %v26 = vld [vmem:[%s1 + $0x18] sm:$0xf]
    %v27 = vunpack.c.l.bf16 %v26
    %v28 = vld [vmem:[%s1 + $0x1c] sm:$0xf]
    %v29 = vld [vmem:[%s1 + $0x20] sm:$0xf]
    %v30 = vunpack.c.l.bf16 %v28
    %v31 = vunpack.c.l.bf16 %v29
    %v32 = vld [vmem:[%s1 + $0x24] sm:$0x1]
    %v33 = vunpack.c.l.bf16 %v32
    %v34 = vld [vmem:[%s1 + $0x28] sm:$0x1]
    %v35 = vunpack.c.l.bf16 %v34
    %v36 = vld [vmem:[%s1 + $0x2c] sm:$0x1]
    %v37 = vunpack.c.l.bf16 %v36
    %v38 = vld [vmem:[%s1 + $0x30] sm:$0x1]
    %v39 = vunpack.c.l.bf16 %v38
    %v40 = vlaneseq
    %v41 = vshrl.u32 %v40, 7
    %v42 = vsub.s32 0, %v41
    %v43 = vrot.slane %v33, %v42
    %vm44 = vcmask 261120
    %v46 = vsel %vm44, %v13, 0
    %48 = vmatprep.subr.mxu0 0.0
    %49 = vmatpush1.msra.mxu0 %v18
    %50 = vmatprep.subr.mxu0 0.0
    %51 = vmatpush1.msra.mxu0 %v19
    %52 = vmatprep.subr.mxu0 0.0
    %53 = vmatpush1.msra.mxu0 %v20
    %54 = vmatprep.subr.mxu0 0.0
    %55 = vmatpush1.msra.mxu0 %v21
    %56 = vmatprep.subr.mxu0 0.0
    %57 = vmatpush1.msra.mxu0 0.0
    %58 = vmatprep.subr.mxu0 0.0
    %59 = vmatpush1.msra.mxu0 0.0
    %60 = vmatprep.subr.mxu0 0.0
    %61 = vmatpush1.msra.mxu0 0.0
    %62 = vmatprep.subr.mxu0 0.0
    %63 = vmatpush1.msra.mxu0 0.0
    %64 = vmatprep.subr.mxu0 0.0
    %65 = vmatpush1.msra.mxu0 0.0
    %66 = vmatprep.subr.mxu0 0.0
    %67 = vmatpush1.msra.mxu0 0.0
    %68 = vmatprep.subr.mxu0 0.0
    %69 = vmatpush1.msra.mxu0 0.0
    %70 = vmatprep.subr.mxu0 0.0
    %71 = vmatpush1.msra.mxu0 0.0
    %72 = vmatprep.subr.mxu0 0.0
    %73 = vmatpush1.msra.mxu0 0.0
    %74 = vmatprep.subr.mxu0 0.0
    %75 = vmatpush1.msra.mxu0 0.0
    %76 = vmatprep.subr.mxu0 0.0
    %77 = vmatpush1.msra.mxu0 0.0
    %78 = vmatprep.subr.mxu0 0.0
    %79 = vmatpush1.msra.mxu0 0.0
    %80 = vmatprep.subr.mxu0 0.0
    %81 = vmatpush1.msra.mxu0 0.0
    %82 = vmatprep.subr.mxu0 0.0
    %83 = vmatpush1.msra.mxu0 0.0
    %84 = vmatprep.subr.mxu0 0.0
    %85 = vmatpush1.msra.mxu0 0.0
    %86 = vmatprep.subr.mxu0 0.0
    %87 = vmatpush1.msra.mxu0 0.0
    %88 = vmatprep.subr.mxu0 0.0
    %89 = vmatpush1.msra.mxu0 0.0
    %90 = vmatprep.subr.mxu0 0.0
    %91 = vmatpush1.msra.mxu0 0.0
    %92 = vmatprep.subr.mxu0 0.0
    %93 = vmatpush1.msra.mxu0 0.0
    %94 = vmatprep.subr.mxu0 0.0
    %95 = vmatpush1.msra.mxu0 0.0
    %96 = vmatprep.subr.mxu0 0.0
    %97 = vmatpush1.msra.mxu0 0.0
    %98 = vmatprep.subr.mxu0 0.0
    %99 = vmatpush1.msra.mxu0 0.0
    %100 = vmatprep.subr.mxu0 0.0
    %101 = vmatpush1.msra.mxu0 0.0
    %102 = vmatprep.subr.mxu0 0.0
    %103 = vmatpush1.msra.mxu0 0.0
    %104 = vmatprep.subr.mxu0 0.0
    %105 = vmatpush1.msra.mxu0 0.0
    %106 = vmatprep.subr.mxu0 0.0
    %107 = vmatpush1.msra.mxu0 0.0
    %108 = vmatprep.subr.mxu0 0.0
    %109 = vmatpush1.msra.mxu0 0.0
    %110 = vmatprep.subr.mxu0 0.0
    %111 = vmatpush1.msra.mxu0 0.0
    %112 = vmatprep.mubr.f32.mxu0 0.0
    %113 = vmatmul.mubr.f32.gmra.mrb[0].mxu0 %v46
    %v114 = vpop.f32.mrb[0].mxu0
    %v115 = vadd.f32 %v43, %v114
    %v116 = vpop.f32.mrb[0].mxu0
    %117 = vdwg.mxu0
    %v118 = vmax.f32 %v115, 0.0
    %v119 = vlaneseq
    %v120 = vshrl.u32 %v119, 7
    %v121 = vsub.s32 0, %v120
    %v122 = vrot.slane %v35, %v121
    %vm123 = vcmask 130048
    %v125 = vsel %vm123, %v118, 0
    %127 = vmatprep.subr.mxu0 0.0
    %128 = vmatpush1.msra.mxu0 %v24
    %129 = vmatprep.subr.mxu0 0.0
    %130 = vmatpush1.msra.mxu0 %v25
    %131 = vmatprep.subr.mxu0 0.0
    %132 = vmatpush1.msra.mxu0 0.0
    %133 = vmatprep.subr.mxu0 0.0
    %134 = vmatpush1.msra.mxu0 0.0
    %135 = vmatprep.subr.mxu0 0.0
    %136 = vmatpush1.msra.mxu0 0.0
    %137 = vmatprep.subr.mxu0 0.0
    %138 = vmatpush1.msra.mxu0 0.0
    %139 = vmatprep.subr.mxu0 0.0
    %140 = vmatpush1.msra.mxu0 0.0
    %141 = vmatprep.subr.mxu0 0.0
    %142 = vmatpush1.msra.mxu0 0.0
    %143 = vmatprep.subr.mxu0 0.0
    %144 = vmatpush1.msra.mxu0 0.0
    %145 = vmatprep.subr.mxu0 0.0
    %146 = vmatpush1.msra.mxu0 0.0
    %147 = vmatprep.subr.mxu0 0.0
    %148 = vmatpush1.msra.mxu0 0.0
    %149 = vmatprep.subr.mxu0 0.0
    %150 = vmatpush1.msra.mxu0 0.0
    %151 = vmatprep.subr.mxu0 0.0
    %152 = vmatpush1.msra.mxu0 0.0
    %153 = vmatprep.subr.mxu0 0.0
    %154 = vmatpush1.msra.mxu0 0.0
    %155 = vmatprep.subr.mxu0 0.0
    %156 = vmatpush1.msra.mxu0 0.0
    %157 = vmatprep.subr.mxu0 0.0
    %158 = vmatpush1.msra.mxu0 0.0
    %159 = vmatprep.subr.mxu0 0.0
    %160 = vmatpush1.msra.mxu0 0.0
    %161 = vmatprep.subr.mxu0 0.0
    %162 = vmatpush1.msra.mxu0 0.0
    %163 = vmatprep.subr.mxu0 0.0
    %164 = vmatpush1.msra.mxu0 0.0
    %165 = vmatprep.subr.mxu0 0.0
    %166 = vmatpush1.msra.mxu0 0.0
    %167 = vmatprep.subr.mxu0 0.0
    %168 = vmatpush1.msra.mxu0 0.0
    %169 = vmatprep.subr.mxu0 0.0
    %170 = vmatpush1.msra.mxu0 0.0
    %171 = vmatprep.subr.mxu0 0.0
    %172 = vmatpush1.msra.mxu0 0.0
    %173 = vmatprep.subr.mxu0 0.0
    %174 = vmatpush1.msra.mxu0 0.0
    %175 = vmatprep.subr.mxu0 0.0
    %176 = vmatpush1.msra.mxu0 0.0
    %177 = vmatprep.subr.mxu0 0.0
    %178 = vmatpush1.msra.mxu0 0.0
    %179 = vmatprep.subr.mxu0 0.0
    %180 = vmatpush1.msra.mxu0 0.0
    %181 = vmatprep.subr.mxu0 0.0
    %182 = vmatpush1.msra.mxu0 0.0
    %183 = vmatprep.subr.mxu0 0.0
    %184 = vmatpush1.msra.mxu0 0.0
    %185 = vmatprep.subr.mxu0 0.0
    %186 = vmatpush1.msra.mxu0 0.0
    %187 = vmatprep.subr.mxu0 0.0
    %188 = vmatpush1.msra.mxu0 0.0
    %189 = vmatprep.subr.mxu0 0.0
    %190 = vmatpush1.msra.mxu0 0.0
    %191 = vmatprep.mubr.f32.mxu0 0.0
    %192 = vmatmul.mubr.f32.gmra.mrb[0].mxu0 %v125
    %v193 = vpop.f32.mrb[0].mxu0
    %v194 = vadd.f32 %v122, %v193
    %v195 = vpop.f32.mrb[0].mxu0
    %196 = vdwg.mxu0
    %v197 = vmul.f32 %v194, 0.5
    %v198 = vmul.f32 %v197, 1.442695
    %v199 = vpow.pop %v198
    %201 = vrot.lane.b32.xlu0 %v199, 24
    %v202 = vpop.permute.xlu0 %201
    %v204 = vmul.f32 %v13, %v202
    %206 = vrot.lane.b32.xlu0 %v194, 32
    %v207 = vpop.permute.xlu0 %206
    %v209 = vadd.f32 %v204, %v207
    %v210 = vlaneseq
    %v211 = vshrl.u32 %v210, 7
    %v212 = vsub.s32 0, %v211
    %v213 = vrot.slane %v37, %v212
    %215 = vrot.lane.b32.xlu0 %v209, 96
    %v216 = vpop.permute.xlu0 %215
    %vm217 = vcmask 64512
    %v218 = vsel %vm217, %v216, 0
    %220 = vmatprep.subr.mxu0 0.0
    %221 = vmatpush1.msra.mxu0 %v27
    %222 = vmatprep.subr.mxu0 0.0
    %223 = vmatpush1.msra.mxu0 0.0
    %224 = vmatprep.subr.mxu0 0.0
    %225 = vmatpush1.msra.mxu0 0.0
    %226 = vmatprep.subr.mxu0 0.0
    %227 = vmatpush1.msra.mxu0 0.0
    %228 = vmatprep.subr.mxu0 0.0
    %229 = vmatpush1.msra.mxu0 0.0
    %230 = vmatprep.subr.mxu0 0.0
    %231 = vmatpush1.msra.mxu0 0.0
    %232 = vmatprep.subr.mxu0 0.0
    %233 = vmatpush1.msra.mxu0 0.0
    %234 = vmatprep.subr.mxu0 0.0
    %235 = vmatpush1.msra.mxu0 0.0
    %236 = vmatprep.subr.mxu0 0.0
    %237 = vmatpush1.msra.mxu0 0.0
    %238 = vmatprep.subr.mxu0 0.0
    %239 = vmatpush1.msra.mxu0 0.0
    %240 = vmatprep.subr.mxu0 0.0
    %241 = vmatpush1.msra.mxu0 0.0
    %242 = vmatprep.subr.mxu0 0.0
    %243 = vmatpush1.msra.mxu0 0.0
    %244 = vmatprep.subr.mxu0 0.0
    %245 = vmatpush1.msra.mxu0 0.0
    %246 = vmatprep.subr.mxu0 0.0
    %247 = vmatpush1.msra.mxu0 0.0
    %248 = vmatprep.subr.mxu0 0.0
    %249 = vmatpush1.msra.mxu0 0.0
    %250 = vmatprep.subr.mxu0 0.0
    %251 = vmatpush1.msra.mxu0 0.0
    %252 = vmatprep.subr.mxu0 0.0
    %253 = vmatpush1.msra.mxu0 0.0
    %254 = vmatprep.subr.mxu0 0.0
    %255 = vmatpush1.msra.mxu0 0.0
    %256 = vmatprep.subr.mxu0 0.0
    %257 = vmatpush1.msra.mxu0 0.0
    %258 = vmatprep.subr.mxu0 0.0
    %259 = vmatpush1.msra.mxu0 0.0
    %260 = vmatprep.subr.mxu0 0.0
    %261 = vmatpush1.msra.mxu0 0.0
    %262 = vmatprep.subr.mxu0 0.0
    %263 = vmatpush1.msra.mxu0 0.0
    %264 = vmatprep.subr.mxu0 0.0
    %265 = vmatpush1.msra.mxu0 0.0
    %266 = vmatprep.subr.mxu0 0.0
    %267 = vmatpush1.msra.mxu0 0.0
    %268 = vmatprep.subr.mxu0 0.0
    %269 = vmatpush1.msra.mxu0 0.0
    %270 = vmatprep.subr.mxu0 0.0
    %271 = vmatpush1.msra.mxu0 0.0
    %272 = vmatprep.subr.mxu0 0.0
    %273 = vmatpush1.msra.mxu0 0.0
    %274 = vmatprep.subr.mxu0 0.0
    %275 = vmatpush1.msra.mxu0 0.0
    %276 = vmatprep.subr.mxu0 0.0
    %277 = vmatpush1.msra.mxu0 0.0
    %278 = vmatprep.subr.mxu0 0.0
    %279 = vmatpush1.msra.mxu0 0.0
    %280 = vmatprep.subr.mxu0 0.0
    %281 = vmatpush1.msra.mxu0 0.0
    %282 = vmatprep.subr.mxu0 0.0
    %283 = vmatpush1.msra.mxu0 0.0
    %284 = vmatprep.mubr.f32.mxu0 0.0
    %285 = vmatmul.mubr.f32.gmra.mrb[0].mxu0 %v218
    %v286 = vpop.f32.mrb[0].mxu0
    %v287 = vadd.f32 %v213, %v286
    %v288 = vpop.f32.mrb[0].mxu0
    %289 = vdwg.mxu0
    %v290 = vmax.f32 %v287, 0.0
    %v291 = vlaneseq
    %v292 = vshrl.u32 %v291, 7
    %v293 = vsub.s32 0, %v292
    %v294 = vrot.slane %v39, %v293
    %v296 = vsel %vm123, %v290, 0
    %298 = vmatprep.subr.mxu0 0.0
    %299 = vmatpush1.msra.mxu0 %v30
    %300 = vmatprep.subr.mxu0 0.0
    %301 = vmatpush1.msra.mxu0 %v31
    %302 = vmatprep.subr.mxu0 0.0
    %303 = vmatpush1.msra.mxu0 0.0
    %304 = vmatprep.subr.mxu0 0.0
    %305 = vmatpush1.msra.mxu0 0.0
    %306 = vmatprep.subr.mxu0 0.0
    %307 = vmatpush1.msra.mxu0 0.0
    %308 = vmatprep.subr.mxu0 0.0
    %309 = vmatpush1.msra.mxu0 0.0
    %310 = vmatprep.subr.mxu0 0.0
    %311 = vmatpush1.msra.mxu0 0.0
    %312 = vmatprep.subr.mxu0 0.0
    %313 = vmatpush1.msra.mxu0 0.0
    %314 = vmatprep.subr.mxu0 0.0
    %315 = vmatpush1.msra.mxu0 0.0
    %316 = vmatprep.subr.mxu0 0.0
    %317 = vmatpush1.msra.mxu0 0.0
    %318 = vmatprep.subr.mxu0 0.0
    %319 = vmatpush1.msra.mxu0 0.0
    %320 = vmatprep.subr.mxu0 0.0
    %321 = vmatpush1.msra.mxu0 0.0
    %322 = vmatprep.subr.mxu0 0.0
    %323 = vmatpush1.msra.mxu0 0.0
    %324 = vmatprep.subr.mxu0 0.0
    %325 = vmatpush1.msra.mxu0 0.0
    %326 = vmatprep.subr.mxu0 0.0
    %327 = vmatpush1.msra.mxu0 0.0
    %328 = vmatprep.subr.mxu0 0.0
    %329 = vmatpush1.msra.mxu0 0.0
    %330 = vmatprep.subr.mxu0 0.0
    %331 = vmatpush1.msra.mxu0 0.0
    %332 = vmatprep.subr.mxu0 0.0
    %333 = vmatpush1.msra.mxu0 0.0
    %334 = vmatprep.subr.mxu0 0.0
    %335 = vmatpush1.msra.mxu0 0.0
    %336 = vmatprep.subr.mxu0 0.0
    %337 = vmatpush1.msra.mxu0 0.0
    %338 = vmatprep.subr.mxu0 0.0
    %339 = vmatpush1.msra.mxu0 0.0
    %340 = vmatprep.subr.mxu0 0.0
    %341 = vmatpush1.msra.mxu0 0.0
    %342 = vmatprep.subr.mxu0 0.0
    %343 = vmatpush1.msra.mxu0 0.0
    %344 = vmatprep.subr.mxu0 0.0
    %345 = vmatpush1.msra.mxu0 0.0
    %346 = vmatprep.subr.mxu0 0.0
    %347 = vmatpush1.msra.mxu0 0.0
    %348 = vmatprep.subr.mxu0 0.0
    %349 = vmatpush1.msra.mxu0 0.0
    %350 = vmatprep.subr.mxu0 0.0
    %351 = vmatpush1.msra.mxu0 0.0
    %352 = vmatprep.subr.mxu0 0.0
    %353 = vmatpush1.msra.mxu0 0.0
    %354 = vmatprep.subr.mxu0 0.0
    %355 = vmatpush1.msra.mxu0 0.0
    %356 = vmatprep.subr.mxu0 0.0
    %357 = vmatpush1.msra.mxu0 0.0
    %358 = vmatprep.subr.mxu0 0.0
    %359 = vmatpush1.msra.mxu0 0.0
    %360 = vmatprep.subr.mxu0 0.0
    %361 = vmatpush1.msra.mxu0 0.0
    %362 = vmatprep.mubr.f32.mxu0 0.0
    %363 = vmatmul.mubr.f32.gmra.mrb[0].mxu0 %v296
    %v364 = vpop.f32.mrb[0].mxu0
    %v365 = vadd.f32 %v294, %v364
    %v366 = vpop.f32.mrb[0].mxu0
    %367 = vdwg.mxu0
    %v368 = vand.u32 2147483647, %v365
    %v369 = vsub.f32 0.0, %v368
    %v370 = vmul.f32 %v369, 1.442695
    %v371 = vpow.pop %v370
    %vm372 = vcmp.ge.f32.partialorder %v365, 0.0
    %v373 = vadd.f32 %v371, 1.0
    %v374 = vrcp.pop %v373
    %v375 = vmul.f32 1.0, %v374
    %v376 = vmul.f32 %v371, %v374
    %v377 = vsel %vm372, %v375, %v376
    %378 = vrot.lane.b32.xlu0 %v209, 16
    %v379 = vpop.permute.xlu0 %378
    %v381 = vsel %vm44, %v377, %v207
    %vm382 = vcmask 392192
    %v383 = vsel %vm382, %v381, %v379
    %v384 = vpack.c.bf16 %v383, %v383
    %vm385 = vcmask 453632
    %386 = vst.msk [vmem:[#allocation2] sm:$0xf] %vm385, %v384
    // Predicated region
    $region10: #{tpu_custom_call.1} parent=1 // pred_check
      _
    $region11: #{tpu_custom_call.1} parent=1 // pred_check_branch
      %388 = sbr.rel (0) target = $region13
    $region12: #{tpu_custom_call.1} parent=1 // pred_region
      %s390 = ssub.s32 64, 64
      %391 = vsyncadd [#allocation3], %s390
      %s393 = sshll.u32 [#allocation2], 4
      %s394 = int_to_ptr.vmem [resolvable:$true] %s393
      %396 = dma.vmem_to_hbm [thread:$0]  %s394, 64, %s2, [#allocation3]
    $region13: #{tpu_custom_call.1} parent=1 // pred_fallthru
      _
    // Predicated region
    $region14: #{tpu_custom_call.1} parent=1 // pred_check
      _
    $region15: #{tpu_custom_call.1} parent=1 // pred_check_branch
      %398 = sbr.rel (0) target = $region17
    $region16: #{tpu_custom_call.1} parent=1 // pred_region
      %399 = dma.done [#allocation3], 64
    $region17: #{tpu_custom_call.1} parent=1 // pred_fallthru
      _
    %400 = vsyncpa [#allocation3], 1

</llo_original>
